<compile_context>
chip_gen: v5e
topology: v5e:2x2
jax: 0.10.0
libtpu: 0.0.40
codegen_flags: <defaults>
</compile_context>

<pallas_src>
import jax
import jax.numpy as jnp
import numpy as np
from jax.experimental import pallas as pl
from jax.experimental.pallas import tpu as pltpu


# ----------------------------------------------------------------------------
# Kernel: whole fused forward pass for one lane-dense batch tile.
# Batch on lanes (fast, 128-wide), features on sublanes.
# ----------------------------------------------------------------------------
def mlp_kernel(x_ref,           # (2, TB)      f32  (x kept f32: layer 1 is VPU/f32)
               w1_ref, b1_ref,  # (25, 2) wd,  (25, 1) f32
               wh_ref, bh_ref,  # (4, 25, 25) wd, (4, 25, 1) f32
               w6_ref, b6_ref,  # (1, 25) wd,  (1, 1) f32
               o_ref):          # (1, TB)      f32
    # ---- layer 1 (K=2): two broadcast FMAs on the VPU, f32 ----
    x0 = x_ref[0:1, :]                                   # (1, TB) f32
    x1 = x_ref[1:2, :]                                   # (1, TB) f32
    w1 = w1_ref[...].astype(jnp.float32)                 # (25, 2)
    h = w1[:, 0:1] * x0 + w1[:, 1:2] * x1 + b1_ref[...]  # (25, TB) f32
    h = jnp.maximum(h, 0.0)

    # ---- layers 2..5 (25x25), statically unrolled, MXU, f32 accumulation ----
    wd = wh_ref.dtype
    for k in range(4):
        y = jnp.dot(wh_ref[k], h.astype(wd),
                    preferred_element_type=jnp.float32)  # (25, TB) f32
        h = jnp.maximum(y + bh_ref[k], 0.0)

    # ---- layer 6 (25 -> 1), no activation ----
    y = jnp.dot(w6_ref[...], h.astype(wd),
                preferred_element_type=jnp.float32) + b6_ref[...]  # (1, TB)
    o_ref[...] = y.astype(o_ref.dtype)


# ----------------------------------------------------------------------------
# Wrapper
# ----------------------------------------------------------------------------
def _round_up(n, m):
    return ((int(n) + m - 1) // m) * m


def _default_tb():
    """Per-generation default batch tile (lanes per grid step)."""
    try:
        kind = jax.devices()[0].device_kind.lower()
    except Exception:
        kind = ""
    # v6e / v7x: 32 MiB scoped-VMEM default -> TB=16384 is comfortable
    # (live (32,TB) f32 intermediates + double-buffered x/out blocks ~10 MiB).
    # Older gens (v5e: 16 MiB scoped default): stay at 8192 (~5 MiB live).
    if "v6" in kind or "v7" in kind:
        return 16384
    return 8192


def net_forward_t(xt, params, *, tb=None, weight_dtype=jnp.bfloat16,
                  vmem_limit_bytes=None):
    """xt: (2, B) float32 -- batch already on the fast axis, so no extra
    host-side transpose pass over x.  params: 6 pairs (W (out,in), b (out,1))
    in PyTorch layout.  Returns (1, B) float32."""
    B = int(xt.shape[1])
    tb = int(tb) if tb is not None else _default_tb()

    # --- batch tiling: lane-dense, >= 2 even grid steps when possible -------
    b128 = _round_up(B, 128)
    tb_eff = _round_up(min(tb, b128), 128)
    steps = -(-b128 // tb_eff)
    if steps == 1 and b128 > 128:
        # Split a single oversized tile so v7x's 2 TensorCores both get work.
        steps = 2
        tb_eff = _round_up(-(-b128 // steps), 128)
        steps = -(-b128 // tb_eff)
    if steps > 1 and steps % 2 == 1:
        steps += 1                       # even step count -> balanced cores
    Bp = steps * tb_eff

    # --- operands ------------------------------------------------------------
    (w1, b1), (w2, b2), (w3, b3), (w4, b4), (w5, b5), (w6, b6) = params
    wh = jnp.stack([w2, w3, w4, w5], axis=0)             # (4, 25, 25)
    bh = jnp.stack([b2, b3, b4, b5], axis=0)             # (4, 25, 1)

    wd = weight_dtype
    w1c, whc, w6c = w1.astype(wd), wh.astype(wd), w6.astype(wd)
    b1f = b1.astype(jnp.float32)
    bhf = bh.astype(jnp.float32)
    b6f = b6.astype(jnp.float32)

    xt = xt.astype(jnp.float32)                          # x stays f32
    if Bp != B:
        xt = jnp.pad(xt, ((0, 0), (0, Bp - B)))

    # --- cost estimate (advisory) --------------------------------------------
    flops = 2 * (2 * 25 + 4 * 25 * 25 + 25 * 1) * Bp     # ~5150 per point
    bytes_accessed = int(
        xt.size * 4 + Bp * 4
        + sum(int(a.size) * int(a.dtype.itemsize)
              for a in (w1c, b1f, whc, bhf, w6c, b6f)))

    # --- specs ----------------------------------------------------------------
    def batch_spec(rows, t):
        return pl.BlockSpec((rows, t), lambda i: (0, i))

    def const2(shape):
        return pl.BlockSpec(shape, lambda i: (0, 0))

    def const3(shape):
        return pl.BlockSpec(shape, lambda i: (0, 0, 0))

    cp_kwargs = dict(dimension_semantics=("parallel",))
    if vmem_limit_bytes is not None:
        # Only needed when pushing TB well beyond the per-gen defaults.
        cp_kwargs["vmem_limit_bytes"] = int(vmem_limit_bytes)

    out_t = pl.pallas_call(
        mlp_kernel,
        out_shape=jax.ShapeDtypeStruct((1, Bp), jnp.float32),
        grid=(Bp // tb_eff,),
        in_specs=[
            batch_spec(2, tb_eff),                        # x tile streams
            const2(w1c.shape), const2(b1f.shape),         # weights resident
            const3(whc.shape), const3(bhf.shape),
            const2(w6c.shape), const2(b6f.shape),
        ],
        out_specs=batch_spec(1, tb_eff),                  # lane-dense output
        compiler_params=pltpu.CompilerParams(**cp_kwargs),
        cost_estimate=pl.CostEstimate(flops=flops, transcendentals=0,
                                      bytes_accessed=bytes_accessed),
    )(xt, w1c, b1f, whc, bhf, w6c, b6f)

    return out_t[:, :B]                                   # (1, B)


def net_forward(x, params, **kwargs):
    """x: (B, 2) float32 (PyTorch layout).  Returns (B, 1) float32.
    For large-B pipelines, feed (2, B) directly to `net_forward_t` to avoid
    the extra host-side transpose pass over x."""
    return net_forward_t(x.T, params, **kwargs).T


# ----------------------------------------------------------------------------
# Params / reference
# ----------------------------------------------------------------------------
def init_params(key):
    """Deterministic init matching PyTorch nn.Linear defaults, (out, in) layout."""
    dims = [(25, 2), (25, 25), (25, 25), (25, 25), (25, 25), (1, 25)]
    params = []
    for (fan_out, fan_in) in dims:
        key, kw, kb = jax.random.split(key, 3)
        bound = 1.0 / np.sqrt(fan_in)
        w = jax.random.uniform(kw, (fan_out, fan_in), jnp.float32, -bound, bound)
        b = jax.random.uniform(kb, (fan_out, 1), jnp.float32, -bound, bound)
        params.append((w, b))
    return params


def reference_forward(x, params):
    """Plain-JAX reference (PyTorch semantics: y = x @ W.T + b)."""
    h = x
    for i, (w, b) in enumerate(params):
        h = h @ w.T + b.T
        if i < len(params) - 1:
            h = jnp.maximum(h, 0.0)
    return h


if __name__ == "__main__":
    key = jax.random.PRNGKey(0)
    key, kx1, kx2 = jax.random.split(key, 3)
    params = init_params(key)

    # --- small batch, single-tile grid --------------------------------------
    B = 8
    x = jax.random.normal(kx1, (B, 2), jnp.float32)
    ref = reference_forward(x, params)

    # f32 weight path: bitwise-equivalent accumulation, tight tolerance.
    out_f32 = jax.block_until_ready(
        net_forward(x, params, weight_dtype=jnp.float32))
    np.testing.assert_allclose(np.asarray(out_f32), np.asarray(ref),
                               rtol=1e-5, atol=1e-5)

    # bf16 weight path (default): f32 accumulation, loose tolerance.
    out_bf16 = jax.block_until_ready(net_forward(x, params))
    np.testing.assert_allclose(np.asarray(out_bf16), np.asarray(ref),
                               rtol=5e-2, atol=5e-2)
    assert out_f32.shape == (B, 1) and out_f32.dtype == jnp.float32

    # --- non-multiple-of-128 batch: exercises padding + 2-step even grid ----
    B2 = 300
    x2 = jax.random.normal(kx2, (B2, 2), jnp.float32)
    ref2 = reference_forward(x2, params)
    out2 = jax.block_until_ready(
        net_forward(x2, params, weight_dtype=jnp.float32))
    np.testing.assert_allclose(np.asarray(out2), np.asarray(ref2),
                               rtol=1e-5, atol=1e-5)
    assert out2.shape == (B2, 1)

    print("KERNEL_OK")
</pallas_src>

<mosaic_0001>
module attributes {stable_mosaic.version = 11 : i64} {
  func.func @mlp_kernel(%arg0: i32, %arg1: memref<2x128xf32, #tpu.memory_space<vmem>>, %arg2: memref<25x2xf32, #tpu.memory_space<vmem>>, %arg3: memref<25x1xf32, #tpu.memory_space<vmem>>, %arg4: memref<4x25x25xf32, #tpu.memory_space<vmem>>, %arg5: memref<4x25x1xf32, #tpu.memory_space<vmem>>, %arg6: memref<1x25xf32, #tpu.memory_space<vmem>>, %arg7: memref<1x1xf32, #tpu.memory_space<vmem>>, %arg8: memref<1x128xf32, #tpu.memory_space<vmem>>) attributes {dimension_semantics = [#tpu.dimension_semantics<parallel>], iteration_bounds = array<i64: 1>, scalar_prefetch = 0 : i64, scratch_operands = 0 : i64, tpu.core_type = #tpu.core_type<tc>, window_params = [{transform_indices = @transform_0, window_bounds = array<i64: 2, 128>}, {pipeline_mode = #tpu.pipeline_mode<synchronous>, transform_indices = @transform_1, window_bounds = array<i64: 25, 2>}, {pipeline_mode = #tpu.pipeline_mode<synchronous>, transform_indices = @transform_2, window_bounds = array<i64: 25, 1>}, {pipeline_mode = #tpu.pipeline_mode<synchronous>, transform_indices = @transform_3, window_bounds = array<i64: 4, 25, 25>}, {pipeline_mode = #tpu.pipeline_mode<synchronous>, transform_indices = @transform_4, window_bounds = array<i64: 4, 25, 1>}, {pipeline_mode = #tpu.pipeline_mode<synchronous>, transform_indices = @transform_5, window_bounds = array<i64: 1, 25>}, {pipeline_mode = #tpu.pipeline_mode<synchronous>, transform_indices = @transform_6, window_bounds = array<i64: 1, 1>}, {transform_indices = @transform_7, window_bounds = array<i64: 1, 128>}]} {
    %c0 = arith.constant 0 : index
    %c0_0 = arith.constant 0 : index
    %0 = vector.load %arg1[%c0, %c0_0] : memref<2x128xf32, #tpu.memory_space<vmem>>, vector<1x128xf32>
    %c1 = arith.constant 1 : index
    %c0_1 = arith.constant 0 : index
    %1 = vector.load %arg1[%c1, %c0_1] : memref<2x128xf32, #tpu.memory_space<vmem>>, vector<1x128xf32>
    %c0_2 = arith.constant 0 : index
    %c0_3 = arith.constant 0 : index
    %2 = vector.load %arg2[%c0_2, %c0_3] : memref<25x2xf32, #tpu.memory_space<vmem>>, vector<25x2xf32>
    %3 = vector.extract_strided_slice %2 {offsets = [0, 0], sizes = [25, 1], strides = [1, 1]} : vector<25x2xf32> to vector<25x1xf32>
    %4 = vector.broadcast %3 : vector<25x1xf32> to vector<25x128xf32>
    %5 = vector.broadcast %0 : vector<1x128xf32> to vector<25x128xf32>
    %6 = arith.mulf %4, %5 : vector<25x128xf32>
    %7 = vector.extract_strided_slice %2 {offsets = [0, 1], sizes = [25, 1], strides = [1, 1]} : vector<25x2xf32> to vector<25x1xf32>
    %8 = vector.broadcast %7 : vector<25x1xf32> to vector<25x128xf32>
    %9 = vector.broadcast %1 : vector<1x128xf32> to vector<25x128xf32>
    %10 = arith.mulf %8, %9 : vector<25x128xf32>
    %11 = arith.addf %6, %10 : vector<25x128xf32>
    %c0_4 = arith.constant 0 : index
    %c0_5 = arith.constant 0 : index
    %12 = vector.load %arg3[%c0_4, %c0_5] : memref<25x1xf32, #tpu.memory_space<vmem>>, vector<25x1xf32>
    %13 = vector.broadcast %12 : vector<25x1xf32> to vector<25x128xf32>
    %14 = arith.addf %11, %13 : vector<25x128xf32>
    %cst = arith.constant 0.000000e+00 : f32
    %15 = vector.broadcast %cst : f32 to vector<25x128xf32>
    %16 = arith.maximumf %14, %15 : vector<25x128xf32>
    %c0_6 = arith.constant 0 : index
    %c0_7 = arith.constant 0 : index
    %c0_8 = arith.constant 0 : index
    %17 = vector.load %arg4[%c0_6, %c0_7, %c0_8] : memref<4x25x25xf32, #tpu.memory_space<vmem>>, vector<1x25x25xf32>
    %18 = vector.shape_cast %17 : vector<1x25x25xf32> to vector<25x25xf32>
    %cst_9 = arith.constant dense<0.000000e+00> : vector<25x128xf32>
    %19 = tpu.matmul %18, %16, %cst_9 {dimension_numbers = #tpu.dot_dimension_numbers<[1], [0], [0], [1], [0, 0, 1, 1], [], []>} : vector<25x25xf32>, vector<25x128xf32>, vector<25x128xf32> -> vector<25x128xf32>
    %c0_10 = arith.constant 0 : index
    %c0_11 = arith.constant 0 : index
    %c0_12 = arith.constant 0 : index
    %20 = vector.load %arg5[%c0_10, %c0_11, %c0_12] : memref<4x25x1xf32, #tpu.memory_space<vmem>>, vector<1x25x1xf32>
    %21 = vector.shape_cast %20 : vector<1x25x1xf32> to vector<25x1xf32>
    %22 = vector.broadcast %21 : vector<25x1xf32> to vector<25x128xf32>
    %23 = arith.addf %19, %22 : vector<25x128xf32>
    %cst_13 = arith.constant 0.000000e+00 : f32
    %24 = vector.broadcast %cst_13 : f32 to vector<25x128xf32>
    %25 = arith.maximumf %23, %24 : vector<25x128xf32>
    %c1_14 = arith.constant 1 : index
    %c0_15 = arith.constant 0 : index
    %c0_16 = arith.constant 0 : index
    %26 = vector.load %arg4[%c1_14, %c0_15, %c0_16] : memref<4x25x25xf32, #tpu.memory_space<vmem>>, vector<1x25x25xf32>
    %27 = vector.shape_cast %26 : vector<1x25x25xf32> to vector<25x25xf32>
    %cst_17 = arith.constant dense<0.000000e+00> : vector<25x128xf32>
    %28 = tpu.matmul %27, %25, %cst_17 {dimension_numbers = #tpu.dot_dimension_numbers<[1], [0], [0], [1], [0, 0, 1, 1], [], []>} : vector<25x25xf32>, vector<25x128xf32>, vector<25x128xf32> -> vector<25x128xf32>
    %c1_18 = arith.constant 1 : index
    %c0_19 = arith.constant 0 : index
    %c0_20 = arith.constant 0 : index
    %29 = vector.load %arg5[%c1_18, %c0_19, %c0_20] : memref<4x25x1xf32, #tpu.memory_space<vmem>>, vector<1x25x1xf32>
    %30 = vector.shape_cast %29 : vector<1x25x1xf32> to vector<25x1xf32>
    %31 = vector.broadcast %30 : vector<25x1xf32> to vector<25x128xf32>
    %32 = arith.addf %28, %31 : vector<25x128xf32>
    %cst_21 = arith.constant 0.000000e+00 : f32
    %33 = vector.broadcast %cst_21 : f32 to vector<25x128xf32>
    %34 = arith.maximumf %32, %33 : vector<25x128xf32>
    %c2 = arith.constant 2 : index
    %c0_22 = arith.constant 0 : index
    %c0_23 = arith.constant 0 : index
    %35 = vector.load %arg4[%c2, %c0_22, %c0_23] : memref<4x25x25xf32, #tpu.memory_space<vmem>>, vector<1x25x25xf32>
    %36 = vector.shape_cast %35 : vector<1x25x25xf32> to vector<25x25xf32>
    %cst_24 = arith.constant dense<0.000000e+00> : vector<25x128xf32>
    %37 = tpu.matmul %36, %34, %cst_24 {dimension_numbers = #tpu.dot_dimension_numbers<[1], [0], [0], [1], [0, 0, 1, 1], [], []>} : vector<25x25xf32>, vector<25x128xf32>, vector<25x128xf32> -> vector<25x128xf32>
    %c2_25 = arith.constant 2 : index
    %c0_26 = arith.constant 0 : index
    %c0_27 = arith.constant 0 : index
    %38 = vector.load %arg5[%c2_25, %c0_26, %c0_27] : memref<4x25x1xf32, #tpu.memory_space<vmem>>, vector<1x25x1xf32>
    %39 = vector.shape_cast %38 : vector<1x25x1xf32> to vector<25x1xf32>
    %40 = vector.broadcast %39 : vector<25x1xf32> to vector<25x128xf32>
    %41 = arith.addf %37, %40 : vector<25x128xf32>
    %cst_28 = arith.constant 0.000000e+00 : f32
    %42 = vector.broadcast %cst_28 : f32 to vector<25x128xf32>
    %43 = arith.maximumf %41, %42 : vector<25x128xf32>
    %c3 = arith.constant 3 : index
    %c0_29 = arith.constant 0 : index
    %c0_30 = arith.constant 0 : index
    %44 = vector.load %arg4[%c3, %c0_29, %c0_30] : memref<4x25x25xf32, #tpu.memory_space<vmem>>, vector<1x25x25xf32>
    %45 = vector.shape_cast %44 : vector<1x25x25xf32> to vector<25x25xf32>
    %cst_31 = arith.constant dense<0.000000e+00> : vector<25x128xf32>
    %46 = tpu.matmul %45, %43, %cst_31 {dimension_numbers = #tpu.dot_dimension_numbers<[1], [0], [0], [1], [0, 0, 1, 1], [], []>} : vector<25x25xf32>, vector<25x128xf32>, vector<25x128xf32> -> vector<25x128xf32>
    %c3_32 = arith.constant 3 : index
    %c0_33 = arith.constant 0 : index
    %c0_34 = arith.constant 0 : index
    %47 = vector.load %arg5[%c3_32, %c0_33, %c0_34] : memref<4x25x1xf32, #tpu.memory_space<vmem>>, vector<1x25x1xf32>
    %48 = vector.shape_cast %47 : vector<1x25x1xf32> to vector<25x1xf32>
    %49 = vector.broadcast %48 : vector<25x1xf32> to vector<25x128xf32>
    %50 = arith.addf %46, %49 : vector<25x128xf32>
    %cst_35 = arith.constant 0.000000e+00 : f32
    %51 = vector.broadcast %cst_35 : f32 to vector<25x128xf32>
    %52 = arith.maximumf %50, %51 : vector<25x128xf32>
    %c0_36 = arith.constant 0 : index
    %c0_37 = arith.constant 0 : index
    %53 = vector.load %arg6[%c0_36, %c0_37] : memref<1x25xf32, #tpu.memory_space<vmem>>, vector<1x25xf32>
    %cst_38 = arith.constant dense<0.000000e+00> : vector<1x128xf32>
    %54 = tpu.matmul %53, %52, %cst_38 {dimension_numbers = #tpu.dot_dimension_numbers<[1], [0], [0], [1], [0, 0, 1, 1], [], []>} : vector<1x25xf32>, vector<25x128xf32>, vector<1x128xf32> -> vector<1x128xf32>
    %c0_39 = arith.constant 0 : index
    %c0_40 = arith.constant 0 : index
    %55 = vector.load %arg7[%c0_39, %c0_40] : memref<1x1xf32, #tpu.memory_space<vmem>>, vector<1x1xf32>
    %56 = vector.broadcast %55 : vector<1x1xf32> to vector<1x128xf32>
    %57 = arith.addf %54, %56 : vector<1x128xf32>
    %c0_41 = arith.constant 0 : index
    %c0_42 = arith.constant 0 : index
    %58 = vector.load %arg8[%c0_41, %c0_42] : memref<1x128xf32, #tpu.memory_space<vmem>>, vector<1x128xf32>
    tpu.vector_store %arg8[%c0_41, %c0_42], %57 {strides = array<i32>} : memref<1x128xf32, #tpu.memory_space<vmem>>, vector<1x128xf32>,
    return
  }
  func.func @transform_0(%arg0: i32) -> (i32, i32) {
    %c0_i32 = arith.constant 0 : i32
    %c0_i32_0 = arith.constant 0 : i32
    return %c0_i32, %arg0 : i32, i32
  }
  func.func @transform_1(%arg0: i32) -> (i32, i32) {
    %c0_i32 = arith.constant 0 : i32
    %c0_i32_0 = arith.constant 0 : i32
    %c0_i32_1 = arith.constant 0 : i32
    return %c0_i32, %c0_i32_0 : i32, i32
  }
  func.func @transform_2(%arg0: i32) -> (i32, i32) {
    %c0_i32 = arith.constant 0 : i32
    %c0_i32_0 = arith.constant 0 : i32
    %c0_i32_1 = arith.constant 0 : i32
    return %c0_i32, %c0_i32_0 : i32, i32
  }
  func.func @transform_3(%arg0: i32) -> (i32, i32, i32) {
    %c0_i32 = arith.constant 0 : i32
    %c0_i32_0 = arith.constant 0 : i32
    %c0_i32_1 = arith.constant 0 : i32
    %c0_i32_2 = arith.constant 0 : i32
    return %c0_i32, %c0_i32_0, %c0_i32_1 : i32, i32, i32
  }
  func.func @transform_4(%arg0: i32) -> (i32, i32, i32) {
    %c0_i32 = arith.constant 0 : i32
    %c0_i32_0 = arith.constant 0 : i32
    %c0_i32_1 = arith.constant 0 : i32
    %c0_i32_2 = arith.constant 0 : i32
    return %c0_i32, %c0_i32_0, %c0_i32_1 : i32, i32, i32
  }
  func.func @transform_5(%arg0: i32) -> (i32, i32) {
    %c0_i32 = arith.constant 0 : i32
    %c0_i32_0 = arith.constant 0 : i32
    %c0_i32_1 = arith.constant 0 : i32
    return %c0_i32, %c0_i32_0 : i32, i32
  }
  func.func @transform_6(%arg0: i32) -> (i32, i32) {
    %c0_i32 = arith.constant 0 : i32
    %c0_i32_0 = arith.constant 0 : i32
    %c0_i32_1 = arith.constant 0 : i32
    return %c0_i32, %c0_i32_0 : i32, i32
  }
  func.func @transform_7(%arg0: i32) -> (i32, i32) {
    %c0_i32 = arith.constant 0 : i32
    %c0_i32_0 = arith.constant 0 : i32
    return %c0_i32, %arg0 : i32, i32
  }
}

</mosaic_0001>

<llo_original>
// kernel: tpu_custom_call.1
$region0: #{tpu_custom_call.1}
  #allocation0 [shape = 'u32[]', space=smem, size = 0x4, offset = 0x4, fixed_abs, tag = 'smem constant byte address 0x4 - core index']
  #allocation1 [shape = 'u32[72,128]{1,0:T(1,128)}', space=vmem, size = 0x9000, scoped, tag = 'internal scratch']
  #allocation2 [shape = 'f32[1,1]{1,0:T(1,128)S(1)}', space=vmem, size = 0x200, scoped, tag = 'scoped memory for tpu_custom_call.1']
  %s0 = inlined_call_operand.vmem [shape: f32[2,128], index: 0, kind: input, shape index: {}]
  %s1 = inlined_call_operand.vmem [shape: f32[25,2], index: 1, kind: input, shape index: {}]
  %s2 = inlined_call_operand.vmem [shape: f32[25,1], index: 2, kind: input, shape index: {}]
  %s3 = inlined_call_operand.vmem [shape: f32[4,25,25], index: 3, kind: input, shape index: {}]
  %s4 = inlined_call_operand.vmem [shape: f32[4,25,1], index: 4, kind: input, shape index: {}]
  %s5 = inlined_call_operand.vmem [shape: f32[1,25], index: 5, kind: input, shape index: {}]
  %s6 = inlined_call_operand.<no memory space> [shape: f32[1,1], index: 6, kind: input, shape index: {}]
  %s7 = inlined_call_operand.hbm [shape: f32[1,128], index: 7, kind: output, shape index: {}]
  %s8 = sld [smem:[#allocation0]]
  $region38: #{tpu_custom_call.1} parent=0
    _
  %s10 = ssub.s32 1, %s8
  %s11 = scalar_select 0, %s10, %s8
  %v12 = vstv %s6
  %13 = vst [vmem:[#allocation2] sm:$0x1] %v12
  $region1: #{tpu_custom_call.1} parent=0
    #allocation3 [shape = 'u8[512]{0}', space=vmem, size = 0x400, scoped, tag = 'output window, operand 0, single buffered']
    #allocation4 [shape = 's32[1]{0}', space=sflag, size = 0x4, scoped, tag = 'scoped memory for tpu_custom_call.1']
    %14 = vsyncpa [#allocation4], 0
    // Predicated region
    $region2: #{tpu_custom_call.1} parent=1 // pred_check
      _
    $region3: #{tpu_custom_call.1} parent=1 // pred_check_branch
      %16 = sbr.rel (0) target = $region5
    $region4: #{tpu_custom_call.1} parent=1 // pred_region
      _
    $region5: #{tpu_custom_call.1} parent=1 // pred_fallthru
      _
    // Predicated region
    $region6: #{tpu_custom_call.1} parent=1 // pred_check
      _
    $region7: #{tpu_custom_call.1} parent=1 // pred_check_branch
      %18 = sbr.rel (0) target = $region9
    $region8: #{tpu_custom_call.1} parent=1 // pred_region
      _
    $region9: #{tpu_custom_call.1} parent=1 // pred_fallthru
      _
    // Predicated region
    $region10: #{tpu_custom_call.1} parent=1 // pred_check
      _
    $region11: #{tpu_custom_call.1} parent=1 // pred_check_branch
      %20 = sbr.rel (0) target = $region13
    $region12: #{tpu_custom_call.1} parent=1 // pred_region
      _
    $region13: #{tpu_custom_call.1} parent=1 // pred_fallthru
      _
    // Predicated region
    $region14: #{tpu_custom_call.1} parent=1 // pred_check
      _
    $region15: #{tpu_custom_call.1} parent=1 // pred_check_branch
      %22 = sbr.rel (0) target = $region17
    $region16: #{tpu_custom_call.1} parent=1 // pred_region
      _
    $region17: #{tpu_custom_call.1} parent=1 // pred_fallthru
      _
    // Predicated region
    $region18: #{tpu_custom_call.1} parent=1 // pred_check
      _
    $region19: #{tpu_custom_call.1} parent=1 // pred_check_branch
      %24 = sbr.rel (0) target = $region21
    $region20: #{tpu_custom_call.1} parent=1 // pred_region
      _
    $region21: #{tpu_custom_call.1} parent=1 // pred_fallthru
      _
    // Predicated region
    $region22: #{tpu_custom_call.1} parent=1 // pred_check
      _
    $region23: #{tpu_custom_call.1} parent=1 // pred_check_branch
      %26 = sbr.rel (0) target = $region25
    $region24: #{tpu_custom_call.1} parent=1 // pred_region
      _
    $region25: #{tpu_custom_call.1} parent=1 // pred_fallthru
      _
    // Predicated region
    $region26: #{tpu_custom_call.1} parent=1 // pred_check
      _
    $region27: #{tpu_custom_call.1} parent=1 // pred_check_branch
      %28 = sbr.rel (0) target = $region29
    $region28: #{tpu_custom_call.1} parent=1 // pred_region
      _
    $region29: #{tpu_custom_call.1} parent=1 // pred_fallthru
      _
    %v29 = vld [vmem:[%s0] sm:$0x1]
    %v30 = vld [vmem:[%s0 + $0x1] sm:$0x1]
    %v31 = vld [vmem:[%s1] sm:$0xff]
    %v32 = vld [vmem:[%s1 + $0x8] sm:$0xff]
    %v33 = vld [vmem:[%s1 + $0x10] sm:$0xff]
    %v34 = vld [vmem:[%s1 + $0x18] sm:$0x1]
    %36 = vset.pattern.permute.xlu0 0
    %37 = vperm.xlu0 %36, %v31
    %v38 = vpop.permute.xlu0 %37
    %41 = vset.pattern.permute.xlu0 0
    %42 = vperm.xlu0 %41, %v32
    %v43 = vpop.permute.xlu0 %42
    %46 = vset.pattern.permute.xlu0 0
    %47 = vperm.xlu0 %46, %v33
    %v48 = vpop.permute.xlu0 %47
    %51 = vset.pattern.permute.xlu0 0
    %52 = vperm.xlu0 %51, %v34
    %v53 = vpop.permute.xlu0 %52
    %v55 = vperm.slane %v29, 0
    %v56 = vmul.f32 %v38, %v55
    %v57 = vmul.f32 %v43, %v55
    %v58 = vmul.f32 %v48, %v55
    %v59 = vmul.f32 %v53, %v55
    %60 = vset.pattern.permute.xlu0 1
    %61 = vperm.xlu0 %60, %v31
    %v62 = vpop.permute.xlu0 %61
    %64 = vset.pattern.permute.xlu0 1
    %65 = vperm.xlu0 %64, %v32
    %v66 = vpop.permute.xlu0 %65
    %68 = vset.pattern.permute.xlu0 1
    %69 = vperm.xlu0 %68, %v33
    %v70 = vpop.permute.xlu0 %69
    %72 = vset.pattern.permute.xlu0 1
    %73 = vperm.xlu0 %72, %v34
    %v74 = vpop.permute.xlu0 %73
    %v76 = vperm.slane %v30, 0
    %v77 = vmul.f32 %v62, %v76
    %v78 = vmul.f32 %v66, %v76
    %v79 = vmul.f32 %v70, %v76
    %v80 = vmul.f32 %v74, %v76
    %v81 = vadd.f32 %v56, %v77
    %v82 = vadd.f32 %v57, %v78
    %v83 = vadd.f32 %v58, %v79
    %v84 = vadd.f32 %v59, %v80
    %v85 = vld [vmem:[%s2] sm:$0xff]
    %v86 = vld [vmem:[%s2 + $0x8] sm:$0xff]
    %v87 = vld [vmem:[%s2 + $0x10] sm:$0xff]
    %v88 = vld [vmem:[%s2 + $0x18] sm:$0x1]
    %90 = vset.pattern.permute.xlu0 0
    %91 = vperm.xlu0 %90, %v85
    %v92 = vpop.permute.xlu0 %91
    %95 = vset.pattern.permute.xlu0 0
    %96 = vperm.xlu0 %95, %v86
    %v97 = vpop.permute.xlu0 %96
    %100 = vset.pattern.permute.xlu0 0
    %101 = vperm.xlu0 %100, %v87
    %v102 = vpop.permute.xlu0 %101
    %105 = vset.pattern.permute.xlu0 0
    %106 = vperm.xlu0 %105, %v88
    %v107 = vpop.permute.xlu0 %106
    %v109 = vadd.f32 %v81, %v92
    %v110 = vadd.f32 %v82, %v97
    %v111 = vadd.f32 %v83, %v102
    %v112 = vadd.f32 %v84, %v107
    %v113 = vmax.f32 %v109, 0.0
    %v114 = vmax.f32 %v110, 0.0
    %v115 = vmax.f32 %v111, 0.0
    %v116 = vmax.f32 %v112, 0.0
    %v117 = vld [vmem:[%s3] sm:$0xff]
    %v118 = vld [vmem:[%s3 + $0x8] sm:$0xff]
    %v119 = vld [vmem:[%s3 + $0x10] sm:$0xff]
    %v120 = vld [vmem:[%s3 + $0x18] sm:$0x1]
    %v121 = vld [vmem:[%s4] sm:$0xff]
    %v122 = vld [vmem:[%s4 + $0x8] sm:$0xff]
    %v123 = vld [vmem:[%s4 + $0x10] sm:$0xff]
    %v124 = vld [vmem:[%s4 + $0x18] sm:$0x1]
    %126 = vset.pattern.permute.xlu0 0
    %127 = vperm.xlu0 %126, %v121
    %v128 = vpop.permute.xlu0 %127
    %131 = vset.pattern.permute.xlu0 0
    %132 = vperm.xlu0 %131, %v122
    %v133 = vpop.permute.xlu0 %132
    %136 = vset.pattern.permute.xlu0 0
    %137 = vperm.xlu0 %136, %v123
    %v138 = vpop.permute.xlu0 %137
    %141 = vset.pattern.permute.xlu0 0
    %142 = vperm.xlu0 %141, %v124
    %v143 = vpop.permute.xlu0 %142
    %vm145 = vcmask 203776
    %v147 = vsel %vm145, %v117, 0
    %v150 = vsel %vm145, %v118, 0
    %v153 = vsel %vm145, %v119, 0
    %v156 = vsel %vm145, %v120, 0
    %vm158 = vcmask 1040384
    %v160 = vsel %vm158, %v116, 0
    %162 = vmatpush.msra.mxu0 0.0
    %163 = vmatpush.msra.mxu0 0.0
    %164 = vmatpush.msra.mxu0 0.0
    %165 = vmatpush.msra.mxu0 0.0
    %166 = vmatpush.msra.mxu0 0.0
    %167 = vmatpush.msra.mxu0 0.0
    %168 = vmatpush.msra.mxu0 0.0
    %169 = vmatpush.msra.mxu0 0.0
    %170 = vmatpush.msra.mxu0 0.0
    %171 = vmatpush.msra.mxu0 0.0
    %172 = vmatpush.msra.mxu0 0.0
    %173 = vmatpush.msra.mxu0 0.0
    %174 = vmatpush.msra.mxu0 %v160
    %175 = vmatpush.msra.mxu0 %v115
    %176 = vmatpush.msra.mxu0 %v114
    %177 = vmatpush.msra.mxu0 %v113
    %178 = vmatmul.f32.gmra.mxu0 %v147
    %v179 = vpop.f32.mrf.mxu0
    %v180 = vadd.f32 %v128, %v179
    %181 = vmatmul.f32.gmra.mxu0 %v150
    %v182 = vpop.f32.mrf.mxu0
    %v183 = vadd.f32 %v133, %v182
    %184 = vmatmul.f32.gmra.mxu0 %v153
    %v185 = vpop.f32.mrf.mxu0
    %v186 = vadd.f32 %v138, %v185
    %187 = vmatmul.f32.gmra.mxu0 %v156
    %v188 = vpop.f32.mrf.mxu0
    %v189 = vadd.f32 %v143, %v188
    %190 = vdwg.mxu0
    %v191 = vmax.f32 %v180, 0.0
    %v192 = vmax.f32 %v183, 0.0
    %v193 = vmax.f32 %v186, 0.0
    %v194 = vmax.f32 %v189, 0.0
    %s195 = scalar_lea.vmem %s3, 32
    %v196 = vld [vmem:[%s195] sm:$0xff]
    %v197 = vld [vmem:[%s195 + $0x8] sm:$0xff]
    %v198 = vld [vmem:[%s195 + $0x10] sm:$0xff]
    %v199 = vld [vmem:[%s195 + $0x18] sm:$0x1]
    %s200 = scalar_lea.vmem %s4, 32
    %v201 = vld [vmem:[%s200] sm:$0xff]
    %v202 = vld [vmem:[%s200 + $0x8] sm:$0xff]
    %v203 = vld [vmem:[%s200 + $0x10] sm:$0xff]
    %v204 = vld [vmem:[%s200 + $0x18] sm:$0x1]
    %206 = vset.pattern.permute.xlu0 0
    %207 = vperm.xlu0 %206, %v201
    %v208 = vpop.permute.xlu0 %207
    %211 = vset.pattern.permute.xlu0 0
    %212 = vperm.xlu0 %211, %v202
    %v213 = vpop.permute.xlu0 %212
    %216 = vset.pattern.permute.xlu0 0
    %217 = vperm.xlu0 %216, %v203
    %v218 = vpop.permute.xlu0 %217
    %221 = vset.pattern.permute.xlu0 0
    %222 = vperm.xlu0 %221, %v204
    %v223 = vpop.permute.xlu0 %222
    %v226 = vsel %vm145, %v196, 0
    %v229 = vsel %vm145, %v197, 0
    %v232 = vsel %vm145, %v198, 0
    %v235 = vsel %vm145, %v199, 0
    %v238 = vsel %vm158, %v194, 0
    %240 = vmatpush.msra.mxu0 0.0
    %241 = vmatpush.msra.mxu0 0.0
    %242 = vmatpush.msra.mxu0 0.0
    %243 = vmatpush.msra.mxu0 0.0
    %244 = vmatpush.msra.mxu0 0.0
    %245 = vmatpush.msra.mxu0 0.0
    %246 = vmatpush.msra.mxu0 0.0
    %247 = vmatpush.msra.mxu0 0.0
    %248 = vmatpush.msra.mxu0 0.0
    %249 = vmatpush.msra.mxu0 0.0
    %250 = vmatpush.msra.mxu0 0.0
    %251 = vmatpush.msra.mxu0 0.0
    %252 = vmatpush.msra.mxu0 %v238
    %253 = vmatpush.msra.mxu0 %v193
    %254 = vmatpush.msra.mxu0 %v192
    %255 = vmatpush.msra.mxu0 %v191
    %256 = vmatmul.f32.gmra.mxu0 %v226
    %v257 = vpop.f32.mrf.mxu0
    %v258 = vadd.f32 %v208, %v257
    %259 = vmatmul.f32.gmra.mxu0 %v229
    %v260 = vpop.f32.mrf.mxu0
    %v261 = vadd.f32 %v213, %v260
    %262 = vmatmul.f32.gmra.mxu0 %v232
    %v263 = vpop.f32.mrf.mxu0
    %v264 = vadd.f32 %v218, %v263
    %265 = vmatmul.f32.gmra.mxu0 %v235
    %v266 = vpop.f32.mrf.mxu0
    %v267 = vadd.f32 %v223, %v266
    %268 = vdwg.mxu0
    %v269 = vmax.f32 %v258, 0.0
    %v270 = vmax.f32 %v261, 0.0
    %v271 = vmax.f32 %v264, 0.0
    %v272 = vmax.f32 %v267, 0.0
    %s273 = scalar_lea.vmem %s3, 64
    %v274 = vld [vmem:[%s273] sm:$0xff]
    %v275 = vld [vmem:[%s273 + $0x8] sm:$0xff]
    %v276 = vld [vmem:[%s273 + $0x10] sm:$0xff]
    %v277 = vld [vmem:[%s273 + $0x18] sm:$0x1]
    %s278 = scalar_lea.vmem %s4, 64
    %v279 = vld [vmem:[%s278] sm:$0xff]
    %v280 = vld [vmem:[%s278 + $0x8] sm:$0xff]
    %v281 = vld [vmem:[%s278 + $0x10] sm:$0xff]
    %v282 = vld [vmem:[%s278 + $0x18] sm:$0x1]
    %284 = vset.pattern.permute.xlu0 0
    %285 = vperm.xlu0 %284, %v279
    %v286 = vpop.permute.xlu0 %285
    %289 = vset.pattern.permute.xlu0 0
    %290 = vperm.xlu0 %289, %v280
    %v291 = vpop.permute.xlu0 %290
    %294 = vset.pattern.permute.xlu0 0
    %295 = vperm.xlu0 %294, %v281
    %v296 = vpop.permute.xlu0 %295
    %299 = vset.pattern.permute.xlu0 0
    %300 = vperm.xlu0 %299, %v282
    %v301 = vpop.permute.xlu0 %300
    %v304 = vsel %vm145, %v274, 0
    %v307 = vsel %vm145, %v275, 0
    %v310 = vsel %vm145, %v276, 0
    %v313 = vsel %vm145, %v277, 0
    %v316 = vsel %vm158, %v272, 0
    %318 = vmatpush.msra.mxu0 0.0
    %319 = vmatpush.msra.mxu0 0.0
    %320 = vmatpush.msra.mxu0 0.0
    %321 = vmatpush.msra.mxu0 0.0
    %322 = vmatpush.msra.mxu0 0.0
    %323 = vmatpush.msra.mxu0 0.0
    %324 = vmatpush.msra.mxu0 0.0
    %325 = vmatpush.msra.mxu0 0.0
    %326 = vmatpush.msra.mxu0 0.0
    %327 = vmatpush.msra.mxu0 0.0
    %328 = vmatpush.msra.mxu0 0.0
    %329 = vmatpush.msra.mxu0 0.0
    %330 = vmatpush.msra.mxu0 %v316
    %331 = vmatpush.msra.mxu0 %v271
    %332 = vmatpush.msra.mxu0 %v270
    %333 = vmatpush.msra.mxu0 %v269
    %334 = vmatmul.f32.gmra.mxu0 %v304
    %v335 = vpop.f32.mrf.mxu0
    %v336 = vadd.f32 %v286, %v335
    %337 = vmatmul.f32.gmra.mxu0 %v307
    %v338 = vpop.f32.mrf.mxu0
    %v339 = vadd.f32 %v291, %v338
    %340 = vmatmul.f32.gmra.mxu0 %v310
    %v341 = vpop.f32.mrf.mxu0
    %v342 = vadd.f32 %v296, %v341
    %343 = vmatmul.f32.gmra.mxu0 %v313
    %v344 = vpop.f32.mrf.mxu0
    %v345 = vadd.f32 %v301, %v344
    %346 = vdwg.mxu0
    %v347 = vmax.f32 %v336, 0.0
    %v348 = vmax.f32 %v339, 0.0
    %v349 = vmax.f32 %v342, 0.0
    %v350 = vmax.f32 %v345, 0.0
    %s351 = scalar_lea.vmem %s3, 96
    %v352 = vld [vmem:[%s351] sm:$0xff]
    %v353 = vld [vmem:[%s351 + $0x8] sm:$0xff]
    %v354 = vld [vmem:[%s351 + $0x10] sm:$0xff]
    %v355 = vld [vmem:[%s351 + $0x18] sm:$0x1]
    %s356 = scalar_lea.vmem %s4, 96
    %v357 = vld [vmem:[%s356] sm:$0xff]
    %v358 = vld [vmem:[%s356 + $0x8] sm:$0xff]
    %v359 = vld [vmem:[%s356 + $0x10] sm:$0xff]
    %v360 = vld [vmem:[%s356 + $0x18] sm:$0x1]
    %362 = vset.pattern.permute.xlu0 0
    %363 = vperm.xlu0 %362, %v357
    %v364 = vpop.permute.xlu0 %363
    %367 = vset.pattern.permute.xlu0 0
    %368 = vperm.xlu0 %367, %v358
    %v369 = vpop.permute.xlu0 %368
    %372 = vset.pattern.permute.xlu0 0
    %373 = vperm.xlu0 %372, %v359
    %v374 = vpop.permute.xlu0 %373
    %377 = vset.pattern.permute.xlu0 0
    %378 = vperm.xlu0 %377, %v360
    %v379 = vpop.permute.xlu0 %378
    %v382 = vsel %vm145, %v352, 0
    %v385 = vsel %vm145, %v353, 0
    %v388 = vsel %vm145, %v354, 0
    %v391 = vsel %vm145, %v355, 0
    %v394 = vsel %vm158, %v350, 0
    %396 = vmatpush.msra.mxu0 0.0
    %397 = vmatpush.msra.mxu0 0.0
    %398 = vmatpush.msra.mxu0 0.0
    %399 = vmatpush.msra.mxu0 0.0
    %400 = vmatpush.msra.mxu0 0.0
    %401 = vmatpush.msra.mxu0 0.0
    %402 = vmatpush.msra.mxu0 0.0
    %403 = vmatpush.msra.mxu0 0.0
    %404 = vmatpush.msra.mxu0 0.0
    %405 = vmatpush.msra.mxu0 0.0
    %406 = vmatpush.msra.mxu0 0.0
    %407 = vmatpush.msra.mxu0 0.0
    %408 = vmatpush.msra.mxu0 %v394
    %409 = vmatpush.msra.mxu0 %v349
    %410 = vmatpush.msra.mxu0 %v348
    %411 = vmatpush.msra.mxu0 %v347
    %412 = vmatmul.f32.gmra.mxu0 %v382
    %v413 = vpop.f32.mrf.mxu0
    %v414 = vadd.f32 %v364, %v413
    %415 = vmatmul.f32.gmra.mxu0 %v385
    %v416 = vpop.f32.mrf.mxu0
    %v417 = vadd.f32 %v369, %v416
    %418 = vmatmul.f32.gmra.mxu0 %v388
    %v419 = vpop.f32.mrf.mxu0
    %v420 = vadd.f32 %v374, %v419
    %421 = vmatmul.f32.gmra.mxu0 %v391
    %v422 = vpop.f32.mrf.mxu0
    %v423 = vadd.f32 %v379, %v422
    %424 = vdwg.mxu0
    %v425 = vmax.f32 %v414, 0.0
    %v426 = vmax.f32 %v417, 0.0
    %v427 = vmax.f32 %v420, 0.0
    %v428 = vmax.f32 %v423, 0.0
    %v429 = vld [vmem:[%s5] sm:$0x1]
    %v430 = vld [vmem:[#allocation2] sm:$0x1]
    %432 = vset.pattern.permute.xlu0 0
    %433 = vperm.xlu0 %432, %v430
    %v434 = vpop.permute.xlu0 %433
    %v436 = vperm.slane %v434, 0
    %v438 = vsel %vm145, %v429, 0
    %v441 = vsel %vm158, %v428, 0
    %443 = vmatpush.msra.mxu0 0.0
    %444 = vmatpush.msra.mxu0 0.0
    %445 = vmatpush.msra.mxu0 0.0
    %446 = vmatpush.msra.mxu0 0.0
    %447 = vmatpush.msra.mxu0 0.0
    %448 = vmatpush.msra.mxu0 0.0
    %449 = vmatpush.msra.mxu0 0.0
    %450 = vmatpush.msra.mxu0 0.0
    %451 = vmatpush.msra.mxu0 0.0
    %452 = vmatpush.msra.mxu0 0.0
    %453 = vmatpush.msra.mxu0 0.0
    %454 = vmatpush.msra.mxu0 0.0
    %455 = vmatpush.msra.mxu0 %v441
    %456 = vmatpush.msra.mxu0 %v427
    %457 = vmatpush.msra.mxu0 %v426
    %458 = vmatpush.msra.mxu0 %v425
    %459 = vmatmul.f32.gmra.mxu0 %v438
    %v460 = vpop.f32.mrf.mxu0
    %v461 = vadd.f32 %v436, %v460
    %462 = vdwg.mxu0
    %463 = vst [vmem:[#allocation3] sm:$0x1] %v461
    // Predicated region
    $region30: #{tpu_custom_call.1} parent=1 // pred_check
      _
    $region31: #{tpu_custom_call.1} parent=1 // pred_check_branch
      %465 = sbr.rel (0) target = $region33
    $region32: #{tpu_custom_call.1} parent=1 // pred_region
      %467 = vsyncadd [#allocation4], 0
      %s469 = sshll.u32 [#allocation3], 4
      %s470 = int_to_ptr.vmem [resolvable:$true] %s469
      %s471 = sshll.u32 %s7, 4
      %s472 = int_to_ptr.hbm [resolvable:$true] %s471
      %474 = dma.vmem_to_hbm [thread:$0]  %s470, 16, %s472, [#allocation4]
    $region33: #{tpu_custom_call.1} parent=1 // pred_fallthru
      _
    // Predicated region
    $region34: #{tpu_custom_call.1} parent=1 // pred_check
      _
    $region35: #{tpu_custom_call.1} parent=1 // pred_check_branch
      %476 = sbr.rel (0) target = $region37
    $region36: #{tpu_custom_call.1} parent=1 // pred_region
      %478 = dma.done [#allocation4], 16
    $region37: #{tpu_custom_call.1} parent=1 // pred_fallthru
      _
    %479 = vsyncpa [#allocation4], 1

</llo_original>
